<compile_context>
chip_gen: v7x
topology: tpu7x:2x2x1
jax: 0.10.0
libtpu: 0.0.40
codegen_flags: <defaults>
</compile_context>

<pallas_src>
import jax
import jax.numpy as jnp
from jax.experimental import pallas as pl
from jax.experimental.pallas import tpu as pltpu


# ----------------------------------------------------------------------------
# Helpers
# ----------------------------------------------------------------------------
def _round_up(x, m):
    return ((x + m - 1) // m) * m


def _vmem_budget_bytes():
    """(physical VMEM, usable budget). Conservative 64 MiB fallback (v7x)."""
    try:
        cap = int(pltpu.get_tpu_info().vmem_capacity_bytes)
    except Exception:
        cap = 64 << 20
    return cap, int(cap * 0.7)


def _vmem_limit(est, cap):
    # Never request less than the 32 MiB default, never more than ~85% physical.
    return int(min(max(32 << 20, int(est * 1.25) + (4 << 20)), int(cap * 0.85)))


def _fused_vmem_bytes(n, f, hp, cp):
    a = 2 * n * n * 2                      # A[b] bf16, double-buffered
    x = 2 * n * f * 2                      # X[b] bf16, double-buffered
    w = (f * hp + hp * cp) * 2 * 2 + (hp + cp) * 4 * 2
    outs = 2 * n * hp * 2 + 2 * n * cp * 4  # hid bf16 + logits f32, double-buffered
    return a + x + w + outs


def _tiled_vmem_bytes(n, f, hp, cp, tm):
    a_rows = 2 * tm * n * 2                 # A row tile bf16, double-buffered
    x_full = n * f * 2                      # X[b] bf16, single-buffered
    xw1_sc = n * hp * 2                     # persistent XW1 scratch (bf16)
    hw2_full = n * cp * 2                   # HW2 slab for agg2 (bf16, single-buffered)
    outs = 2 * tm * hp * 2 + 2 * tm * cp * 2 + 2 * tm * cp * 4
    w = (f * hp + hp * cp) * 2 + (hp + cp) * 4
    return a_rows + x_full + xw1_sc + hw2_full + outs + w


def _pick_row_tile(n, f, hp, cp, budget):
    for t in (1024, 512, 256, 128, 64, 32, 16, 8):
        if n % t == 0 and _tiled_vmem_bytes(n, f, hp, cp, t) <= budget:
            return t
    # TODO(synk): graphs this large need K-tiling of the A contraction; fall
    # back to the smallest legal row tile and rely on vmem_limit_bytes.
    for t in (8, 16, 32, 64, 128):
        if n % t == 0:
            return t
    return n


# ----------------------------------------------------------------------------
# Kernels
# ----------------------------------------------------------------------------
def _fused_gcn_kernel(x_ref, a_ref, w1_ref, b1_ref, w2_ref, b2_ref,
                      hid_ref, out_ref):
    # One graph per grid step; XW1 / hid / HW2 stay on-chip, only hid (bf16)
    # and the lane-dense padded logits slab are written to HBM.
    a = a_ref[...]                                               # (n, n) bf16
    xw1 = jnp.dot(x_ref[...], w1_ref[...],
                  preferred_element_type=jnp.float32)            # (n, hp) f32
    hid = jnp.maximum(
        jnp.dot(a, xw1.astype(jnp.bfloat16),
                preferred_element_type=jnp.float32) + b1_ref[...], 0.0)
    hid_ref[...] = hid.astype(jnp.bfloat16)
    hw2 = jnp.dot(hid.astype(jnp.bfloat16), w2_ref[...],
                  preferred_element_type=jnp.float32)            # (n, cp) f32
    out_ref[...] = (jnp.dot(a, hw2.astype(jnp.bfloat16),
                            preferred_element_type=jnp.float32) + b2_ref[...])


def _agg1_kernel(x_ref, a_ref, w1_ref, b1_ref, w2_ref,
                 hid_ref, hw2_ref, xw1_sc):
    # Fused projection: XW1 computed once per batch element into persistent
    # VMEM scratch (row axis is "arbitrary" so the scratch carry is safe).
    @pl.when(pl.program_id(1) == 0)
    def _():
        xw1_sc[...] = jnp.dot(
            x_ref[...], w1_ref[...],
            preferred_element_type=jnp.float32).astype(jnp.bfloat16)

    hid = jnp.maximum(
        jnp.dot(a_ref[...], xw1_sc[...],
                preferred_element_type=jnp.float32) + b1_ref[...], 0.0)
    hid_ref[...] = hid.astype(jnp.bfloat16)
    hw2_ref[...] = jnp.dot(hid.astype(jnp.bfloat16), w2_ref[...],
                           preferred_element_type=jnp.float32
                           ).astype(jnp.bfloat16)


def _agg2_kernel(a_ref, hw2_ref, b2_ref, out_ref):
    out_ref[...] = (jnp.dot(a_ref[...], hw2_ref[...],
                            preferred_element_type=jnp.float32) + b2_ref[...])


# ----------------------------------------------------------------------------
# Wrapper: batched 2-layer dense GCN
# ----------------------------------------------------------------------------
def _run_tiled(xb, ab, w1p, b1p, w2p, b2p, tm, cap):
    bsz, n, f = xb.shape
    hp = w1p.shape[1]
    cp = w2p.shape[1]
    grid = (bsz, n // tm)
    limit = _vmem_limit(_tiled_vmem_bytes(n, f, hp, cp, tm), cap)
    # Per-batch-constant slabs / weights never change along the row axis:
    # single-buffer them to halve their VMEM footprint (matters on v7x 64 MiB).
    single = dict(pipeline_mode=pl.Buffered(1))

    hid_p, hw2 = pl.pallas_call(
        _agg1_kernel,
        out_shape=(jax.ShapeDtypeStruct((bsz, n, hp), jnp.bfloat16),
                   jax.ShapeDtypeStruct((bsz, n, cp), jnp.bfloat16)),
        grid_spec=pltpu.PrefetchScalarGridSpec(
            num_scalar_prefetch=0,
            grid=grid,
            in_specs=[
                pl.BlockSpec((None, n, f), lambda b, i: (b, 0, 0), **single),
                pl.BlockSpec((None, tm, n), lambda b, i: (b, i, 0)),
                pl.BlockSpec((f, hp), lambda b, i: (0, 0), **single),
                pl.BlockSpec((1, hp), lambda b, i: (0, 0), **single),
                pl.BlockSpec((hp, cp), lambda b, i: (0, 0), **single),
            ],
            out_specs=(
                pl.BlockSpec((None, tm, hp), lambda b, i: (b, i, 0)),
                pl.BlockSpec((None, tm, cp), lambda b, i: (b, i, 0)),
            ),
            scratch_shapes=[pltpu.VMEM((n, hp), jnp.bfloat16)],
        ),
        compiler_params=pltpu.CompilerParams(
            dimension_semantics=("parallel", "arbitrary"),
            vmem_limit_bytes=limit),
    )(xb, ab, w1p, b1p, w2p)

    logits_p = pl.pallas_call(
        _agg2_kernel,
        out_shape=jax.ShapeDtypeStruct((bsz, n, cp), jnp.float32),
        grid_spec=pltpu.PrefetchScalarGridSpec(
            num_scalar_prefetch=0,
            grid=grid,
            in_specs=[
                pl.BlockSpec((None, tm, n), lambda b, i: (b, i, 0)),
                pl.BlockSpec((None, n, cp), lambda b, i: (b, 0, 0), **single),
                pl.BlockSpec((1, cp), lambda b, i: (0, 0), **single),
            ],
            out_specs=pl.BlockSpec((None, tm, cp), lambda b, i: (b, i, 0)),
        ),
        compiler_params=pltpu.CompilerParams(
            dimension_semantics=("parallel", "parallel"),
            vmem_limit_bytes=limit),
    )(ab, hw2, b2p)
    return hid_p, logits_p


def _gcn_forward_impl(x, a, w1p, b1p, w2p, b2p, *, hid_dim, out_dim):
    """x: (B, N, F) f32, a: (B, N, N) f32 -> (logits (B,N,C) f32, hid (B,N,H) bf16)."""
    bsz, n, f = x.shape
    hp = w1p.shape[1]
    cp = w2p.shape[1]
    xb = x.astype(jnp.bfloat16)
    ab = a.astype(jnp.bfloat16)

    cap, budget = _vmem_budget_bytes()
    fused_est = _fused_vmem_bytes(n, f, hp, cp)

    if fused_est <= budget:
        # Single fused kernel: one grid step per graph, batch axis parallel.
        # TODO(synk): with an odd number of graphs this leaves a 2-vs-1 split
        # across v7x's two TensorCores; balancing it would require row-splits
        # that duplicate the full hid/HW2 compute inside the fused kernel.
        hid_p, logits_p = pl.pallas_call(
            _fused_gcn_kernel,
            out_shape=(jax.ShapeDtypeStruct((bsz, n, hp), jnp.bfloat16),
                       jax.ShapeDtypeStruct((bsz, n, cp), jnp.float32)),
            grid_spec=pltpu.PrefetchScalarGridSpec(
                num_scalar_prefetch=0,
                grid=(bsz,),
                in_specs=[
                    pl.BlockSpec((None, n, f), lambda b: (b, 0, 0)),
                    pl.BlockSpec((None, n, n), lambda b: (b, 0, 0)),
                    pl.BlockSpec((f, hp), lambda b: (0, 0)),
                    pl.BlockSpec((1, hp), lambda b: (0, 0)),
                    pl.BlockSpec((hp, cp), lambda b: (0, 0)),
                    pl.BlockSpec((1, cp), lambda b: (0, 0)),
                ],
                out_specs=(
                    pl.BlockSpec((None, n, hp), lambda b: (b, 0, 0)),
                    pl.BlockSpec((None, n, cp), lambda b: (b, 0, 0)),
                ),
            ),
            compiler_params=pltpu.CompilerParams(
                dimension_semantics=("parallel",),
                vmem_limit_bytes=_vmem_limit(fused_est, cap)),
        )(xb, ab, w1p, b1p, w2p, b2p)
    else:
        tm = _pick_row_tile(n, f, hp, cp, budget)
        hid_p, logits_p = _run_tiled(xb, ab, w1p, b1p, w2p, b2p, tm, cap)

    # Slices happen inside the jit (padded class/hidden lanes dropped here).
    return logits_p[:, :, :out_dim], hid_p[:, :, :hid_dim]


gcn_forward = jax.jit(_gcn_forward_impl, static_argnames=("hid_dim", "out_dim"))


# ----------------------------------------------------------------------------
# Basic model (2-layer GCN) + Mixup wrapper
# ----------------------------------------------------------------------------
class BasicGCN:
    def __init__(self, key, in_dim, hid_dim, out_dim):
        k1, k2 = jax.random.split(key)
        s1 = 1.0 / jnp.sqrt(jnp.float32(in_dim))
        s2 = 1.0 / jnp.sqrt(jnp.float32(hid_dim))
        self.in_dim, self.hid_dim, self.out_dim = in_dim, hid_dim, out_dim
        self.w1 = jax.random.uniform(k1, (in_dim, hid_dim), jnp.float32, -s1, s1)
        self.b1 = jnp.zeros((hid_dim,), jnp.float32)
        self.w2 = jax.random.uniform(k2, (hid_dim, out_dim), jnp.float32, -s2, s2)
        self.b2 = jnp.zeros((out_dim,), jnp.float32)

        # Lane-dense (128-padded) + bf16 MXU weights, built ONCE here instead
        # of per forward call. Padded hidden columns are exactly zero through
        # relu; padded class columns are sliced off inside gcn_forward.
        hp = _round_up(hid_dim, 128)
        cp = _round_up(out_dim, 128)
        self.w1p = (jnp.zeros((in_dim, hp), jnp.float32)
                    .at[:, :hid_dim].set(self.w1).astype(jnp.bfloat16))
        self.b1p = jnp.zeros((1, hp), jnp.float32).at[:, :hid_dim].set(self.b1)
        self.w2p = (jnp.zeros((hp, cp), jnp.float32)
                    .at[:hid_dim, :out_dim].set(self.w2).astype(jnp.bfloat16))
        self.b2p = jnp.zeros((1, cp), jnp.float32).at[:, :out_dim].set(self.b2)
        self.hid_list = []

    def __call__(self, x, a):
        squeeze = x.ndim == 2
        if squeeze:
            x, a = x[None], a[None]
        logits, hid = gcn_forward(x, a, self.w1p, self.b1p, self.w2p, self.b2p,
                                  hid_dim=self.hid_dim, out_dim=self.out_dim)
        # hid is returned explicitly from the jitted forward; the Python
        # side-effect stays OUTSIDE the traced function.
        self.hid_list.extend(hid[i] for i in range(hid.shape[0]))
        return logits[0] if squeeze else logits


class Mixup:
    def __init__(self, key, in_dim, hid_dim, out_dim):
        self.model = BasicGCN(key, in_dim, hid_dim, out_dim)

    def forward(self, X, A, mixup_dict=None):
        self.model.hid_list = []
        eq_mixup_logits = None
        neq_mixup_logits = None
        branches = [(X, A)]
        run_eq = run_neq = False
        if mixup_dict is not None:
            eq_x = mixup_dict["eq_mixup_x"]
            neq_x = mixup_dict["neq_mixup_x"]
            run_eq = eq_x.shape[0] > 0
            run_neq = neq_x.shape[0] > 0
            if run_eq:
                branches.append((eq_x, mixup_dict["mixup_adj"]))
            if run_neq:
                branches.append((neq_x, mixup_dict["E"]))

        same_shape = all(x.shape == X.shape and a.shape == A.shape
                         for x, a in branches)
        if same_shape:
            # All branches share weights/shapes: one batched launch.
            xb = jnp.stack([x for x, _ in branches])
            ab = jnp.stack([a for _, a in branches])
            outs = list(self.model(xb, ab))
        else:
            # Fallback for mismatched node counts: separate launches.
            outs = [self.model(x, a) for x, a in branches]

        logits = outs[0]
        idx = 1
        if run_eq:
            eq_mixup_logits = outs[idx]
            idx += 1
        if run_neq:
            neq_mixup_logits = outs[idx]
        return logits, eq_mixup_logits, neq_mixup_logits

    def get_embeddings(self):
        return self.model.hid_list


# ----------------------------------------------------------------------------
# Reference (pure JAX, same bf16/f32 mixed precision) sanity check
# ----------------------------------------------------------------------------
def _ref_gcn(m, x, a):
    bf = jnp.bfloat16
    ab = a.astype(bf)
    xw1 = jnp.dot(x.astype(bf), m.w1p, preferred_element_type=jnp.float32)
    hid = jnp.maximum(jnp.dot(ab, xw1.astype(bf),
                              preferred_element_type=jnp.float32) + m.b1p, 0.0)
    hw2 = jnp.dot(hid.astype(bf), m.w2p, preferred_element_type=jnp.float32)
    logits = jnp.dot(ab, hw2.astype(bf),
                     preferred_element_type=jnp.float32) + m.b2p
    return logits[:, :m.out_dim], hid[:, :m.hid_dim]


if __name__ == "__main__":
    N, F, H, C = 64, 32, 32, 4  # nodes, in-features, hidden, classes

    key = jax.random.PRNGKey(0)
    kx, ka, ke, km, kn, kw = jax.random.split(key, 6)

    def make_adj(k):
        adj = (jax.random.uniform(k, (N, N)) < 0.1).astype(jnp.float32)
        adj = jnp.maximum(adj, adj.T) + jnp.eye(N, dtype=jnp.float32)
        return adj / jnp.sum(adj, axis=1, keepdims=True)

    X = jax.random.normal(kx, (N, F), jnp.float32)
    A = make_adj(ka)
    E = make_adj(ke)
    mixup_adj = make_adj(km)
    eq_mixup_x = jax.random.normal(kn, (N, F), jnp.float32)
    neq_mixup_x = jax.random.normal(jax.random.fold_in(kn, 1), (N, F),
                                    jnp.float32)

    mixup = Mixup(kw, F, H, C)
    mixup_dict = {
        "eq_mixup_x": eq_mixup_x,
        "neq_mixup_x": neq_mixup_x,
        "mixup_adj": mixup_adj,
        "E": E,
    }

    logits, eq_logits, neq_logits = mixup.forward(X, A, mixup_dict)
    jax.block_until_ready((logits, eq_logits, neq_logits))

    m = mixup.model
    ref_main, ref_hid = _ref_gcn(m, X, A)
    ref_eq, _ = _ref_gcn(m, eq_mixup_x, mixup_adj)
    ref_neq, _ = _ref_gcn(m, neq_mixup_x, E)

    assert jnp.allclose(logits, ref_main, atol=1e-3, rtol=1e-3)
    assert jnp.allclose(eq_logits, ref_eq, atol=1e-3, rtol=1e-3)
    assert jnp.allclose(neq_logits, ref_neq, atol=1e-3, rtol=1e-3)
    assert logits.shape == (N, C) and eq_logits.shape == (N, C)

    embs = mixup.get_embeddings()
    assert len(embs) == 3 and embs[0].shape == (N, H)
    assert jnp.allclose(embs[0].astype(jnp.float32), ref_hid,
                        atol=2e-2, rtol=2e-2)

    print("KERNEL_OK")
</pallas_src>

<mosaic_0001>
module attributes {stable_mosaic.version = 11 : i64} {
  func.func @_fused_gcn_kernel(%arg0: i32, %arg1: memref<1x64x32xbf16, #tpu.memory_space<vmem>>, %arg2: memref<1x64x64xbf16, #tpu.memory_space<vmem>>, %arg3: memref<32x128xbf16, #tpu.memory_space<vmem>>, %arg4: memref<1x128xf32, #tpu.memory_space<vmem>>, %arg5: memref<128x128xbf16, #tpu.memory_space<vmem>>, %arg6: memref<1x128xf32, #tpu.memory_space<vmem>>, %arg7: memref<1x64x128xbf16, #tpu.memory_space<vmem>>, %arg8: memref<1x64x128xf32, #tpu.memory_space<vmem>>) attributes {dimension_semantics = [#tpu.dimension_semantics<parallel>], iteration_bounds = array<i64: 3>, scalar_prefetch = 0 : i64, scratch_operands = 0 : i64, tpu.core_type = #tpu.core_type<tc>, window_params = [{transform_indices = @transform_0, window_bounds = array<i64: 1, 64, 32>}, {transform_indices = @transform_1, window_bounds = array<i64: 1, 64, 64>}, {pipeline_mode = #tpu.pipeline_mode<synchronous>, transform_indices = @transform_2, window_bounds = array<i64: 32, 128>}, {pipeline_mode = #tpu.pipeline_mode<synchronous>, transform_indices = @transform_3, window_bounds = array<i64: 1, 128>}, {pipeline_mode = #tpu.pipeline_mode<synchronous>, transform_indices = @transform_4, window_bounds = array<i64: 128, 128>}, {pipeline_mode = #tpu.pipeline_mode<synchronous>, transform_indices = @transform_5, window_bounds = array<i64: 1, 128>}, {transform_indices = @transform_6, window_bounds = array<i64: 1, 64, 128>}, {transform_indices = @transform_7, window_bounds = array<i64: 1, 64, 128>}]} {
    %c0 = arith.constant 0 : index
    %c0_0 = arith.constant 0 : index
    %c0_1 = arith.constant 0 : index
    %0 = vector.load %arg2[%c0, %c0_0, %c0_1] : memref<1x64x64xbf16, #tpu.memory_space<vmem>>, vector<1x64x64xbf16>
    %1 = vector.shape_cast %0 : vector<1x64x64xbf16> to vector<64x64xbf16>
    %c0_2 = arith.constant 0 : index
    %c0_3 = arith.constant 0 : index
    %c0_4 = arith.constant 0 : index
    %2 = vector.load %arg1[%c0_2, %c0_3, %c0_4] : memref<1x64x32xbf16, #tpu.memory_space<vmem>>, vector<1x64x32xbf16>
    %3 = vector.shape_cast %2 : vector<1x64x32xbf16> to vector<64x32xbf16>
    %c0_5 = arith.constant 0 : index
    %c0_6 = arith.constant 0 : index
    %4 = vector.load %arg3[%c0_5, %c0_6] : memref<32x128xbf16, #tpu.memory_space<vmem>>, vector<32x128xbf16>
    %cst = arith.constant dense<0.000000e+00> : vector<64x128xf32>
    %5 = tpu.matmul %3, %4, %cst {dimension_numbers = #tpu.dot_dimension_numbers<[1], [0], [0], [1], [0, 0, 1, 1], [], []>} : vector<64x32xbf16>, vector<32x128xbf16>, vector<64x128xf32> -> vector<64x128xf32>
    %6 = arith.truncf %5 : vector<64x128xf32> to vector<64x128xbf16>
    %cst_7 = arith.constant dense<0.000000e+00> : vector<64x128xf32>
    %7 = tpu.matmul %1, %6, %cst_7 {dimension_numbers = #tpu.dot_dimension_numbers<[1], [0], [0], [1], [0, 0, 1, 1], [], []>} : vector<64x64xbf16>, vector<64x128xbf16>, vector<64x128xf32> -> vector<64x128xf32>
    %c0_8 = arith.constant 0 : index
    %c0_9 = arith.constant 0 : index
    %8 = vector.load %arg4[%c0_8, %c0_9] : memref<1x128xf32, #tpu.memory_space<vmem>>, vector<1x128xf32>
    %9 = vector.broadcast %8 : vector<1x128xf32> to vector<64x128xf32>
    %10 = arith.addf %7, %9 : vector<64x128xf32>
    %cst_10 = arith.constant 0.000000e+00 : f32
    %11 = vector.broadcast %cst_10 : f32 to vector<64x128xf32>
    %12 = arith.maximumf %10, %11 : vector<64x128xf32>
    %13 = arith.truncf %12 : vector<64x128xf32> to vector<64x128xbf16>
    %c0_11 = arith.constant 0 : index
    %c0_12 = arith.constant 0 : index
    %c0_13 = arith.constant 0 : index
    %14 = vector.load %arg7[%c0_11, %c0_12, %c0_13] : memref<1x64x128xbf16, #tpu.memory_space<vmem>>, vector<1x64x128xbf16>
    %15 = vector.shape_cast %14 : vector<1x64x128xbf16> to vector<64x128xbf16>
    %16 = vector.shape_cast %13 : vector<64x128xbf16> to vector<1x64x128xbf16>
    tpu.vector_store %arg7[%c0_11, %c0_12, %c0_13], %16 {strides = array<i32>} : memref<1x64x128xbf16, #tpu.memory_space<vmem>>, vector<1x64x128xbf16>,
    %17 = arith.truncf %12 : vector<64x128xf32> to vector<64x128xbf16>
    %c0_14 = arith.constant 0 : index
    %c0_15 = arith.constant 0 : index
    %18 = vector.load %arg5[%c0_14, %c0_15] : memref<128x128xbf16, #tpu.memory_space<vmem>>, vector<128x128xbf16>
    %cst_16 = arith.constant dense<0.000000e+00> : vector<64x128xf32>
    %19 = tpu.matmul %17, %18, %cst_16 {dimension_numbers = #tpu.dot_dimension_numbers<[1], [0], [0], [1], [0, 0, 1, 1], [], []>} : vector<64x128xbf16>, vector<128x128xbf16>, vector<64x128xf32> -> vector<64x128xf32>
    %20 = arith.truncf %19 : vector<64x128xf32> to vector<64x128xbf16>
    %cst_17 = arith.constant dense<0.000000e+00> : vector<64x128xf32>
    %21 = tpu.matmul %1, %20, %cst_17 {dimension_numbers = #tpu.dot_dimension_numbers<[1], [0], [0], [1], [0, 0, 1, 1], [], []>} : vector<64x64xbf16>, vector<64x128xbf16>, vector<64x128xf32> -> vector<64x128xf32>
    %c0_18 = arith.constant 0 : index
    %c0_19 = arith.constant 0 : index
    %22 = vector.load %arg6[%c0_18, %c0_19] : memref<1x128xf32, #tpu.memory_space<vmem>>, vector<1x128xf32>
    %23 = vector.broadcast %22 : vector<1x128xf32> to vector<64x128xf32>
    %24 = arith.addf %21, %23 : vector<64x128xf32>
    %c0_20 = arith.constant 0 : index
    %c0_21 = arith.constant 0 : index
    %c0_22 = arith.constant 0 : index
    %25 = vector.load %arg8[%c0_20, %c0_21, %c0_22] : memref<1x64x128xf32, #tpu.memory_space<vmem>>, vector<1x64x128xf32>
    %26 = vector.shape_cast %25 : vector<1x64x128xf32> to vector<64x128xf32>
    %27 = vector.shape_cast %24 : vector<64x128xf32> to vector<1x64x128xf32>
    tpu.vector_store %arg8[%c0_20, %c0_21, %c0_22], %27 {strides = array<i32>} : memref<1x64x128xf32, #tpu.memory_space<vmem>>, vector<1x64x128xf32>,
    return
  }
  func.func @transform_0(%arg0: i32) -> (i32, i32, i32) {
    %c0_i32 = arith.constant 0 : i32
    %c0_i32_0 = arith.constant 0 : i32
    %c0_i32_1 = arith.constant 0 : i32
    return %arg0, %c0_i32, %c0_i32_0 : i32, i32, i32
  }
  func.func @transform_1(%arg0: i32) -> (i32, i32, i32) {
    %c0_i32 = arith.constant 0 : i32
    %c0_i32_0 = arith.constant 0 : i32
    %c0_i32_1 = arith.constant 0 : i32
    return %arg0, %c0_i32, %c0_i32_0 : i32, i32, i32
  }
  func.func @transform_2(%arg0: i32) -> (i32, i32) {
    %c0_i32 = arith.constant 0 : i32
    %c0_i32_0 = arith.constant 0 : i32
    %c0_i32_1 = arith.constant 0 : i32
    return %c0_i32, %c0_i32_0 : i32, i32
  }
  func.func @transform_3(%arg0: i32) -> (i32, i32) {
    %c0_i32 = arith.constant 0 : i32
    %c0_i32_0 = arith.constant 0 : i32
    %c0_i32_1 = arith.constant 0 : i32
    return %c0_i32, %c0_i32_0 : i32, i32
  }
  func.func @transform_4(%arg0: i32) -> (i32, i32) {
    %c0_i32 = arith.constant 0 : i32
    %c0_i32_0 = arith.constant 0 : i32
    %c0_i32_1 = arith.constant 0 : i32
    return %c0_i32, %c0_i32_0 : i32, i32
  }
  func.func @transform_5(%arg0: i32) -> (i32, i32) {
    %c0_i32 = arith.constant 0 : i32
    %c0_i32_0 = arith.constant 0 : i32
    %c0_i32_1 = arith.constant 0 : i32
    return %c0_i32, %c0_i32_0 : i32, i32
  }
  func.func @transform_6(%arg0: i32) -> (i32, i32, i32) {
    %c0_i32 = arith.constant 0 : i32
    %c0_i32_0 = arith.constant 0 : i32
    %c0_i32_1 = arith.constant 0 : i32
    return %arg0, %c0_i32, %c0_i32_0 : i32, i32, i32
  }
  func.func @transform_7(%arg0: i32) -> (i32, i32, i32) {
    %c0_i32 = arith.constant 0 : i32
    %c0_i32_0 = arith.constant 0 : i32
    %c0_i32_1 = arith.constant 0 : i32
    return %arg0, %c0_i32, %c0_i32_0 : i32, i32, i32
  }
}

</mosaic_0001>

<llo_original>
// kernel: _gcn_forward_impl.1
$region0: #{_gcn_forward_impl.1}
  #allocation0 [shape = 'u32[]', space=smem, size = 0x4, offset = 0x4, fixed_abs, tag = 'smem constant byte address 0x4 - core index']
  #allocation1 [shape = 'u32[144,128]{1,0:T(1,128)}', space=vmem, size = 0x12000, scoped, tag = 'internal scratch']
  %s0 = inlined_call_operand.vmem [shape: bf16[3,64,32], index: 0, kind: input, shape index: {}]
  %s1 = inlined_call_operand.vmem [shape: bf16[3,64,64], index: 1, kind: input, shape index: {}]
  %s2 = inlined_call_operand.vmem [shape: bf16[32,128], index: 2, kind: input, shape index: {}]
  %s3 = inlined_call_operand.vmem [shape: f32[1,128], index: 3, kind: input, shape index: {}]
  %s4 = inlined_call_operand.vmem [shape: bf16[128,128], index: 4, kind: input, shape index: {}]
  %s5 = inlined_call_operand.vmem [shape: f32[1,128], index: 5, kind: input, shape index: {}]
  %s6 = inlined_call_operand.vmem [shape: bf16[3,64,128], index: 6, kind: output, shape index: {0}]
  %s7 = inlined_call_operand.vmem [shape: f32[3,64,128], index: 7, kind: output, shape index: {1}]
  %8 = xla_tuple %s6, %s7
  %s9 = sld [smem:[#allocation0]]
  $region65: #{_gcn_forward_impl.1} parent=0
    _
  %s11 = ssub.s32 1, %s9
  %s12 = scalar_select 0, %s11, %s9
  loop: start=0, step=1, limit=5
  $region2: #{_gcn_forward_impl.1} parent=0 // loop_pre_header
    _
  $region3: #{_gcn_forward_impl.1} parent=0 // loop_header
    %s14 = sphi 0, %s18
    %p15 = scmp.ge.s32.totalorder %s14, 5
    %s24 = sphi 0, %s26
    %s27 = sphi 0, %s24
    %s28 = sphi 0, %s27
    %s44 = sphi 0, %s28
    %s50 = sphi 0, %s52
    %s53 = sphi 0, %s50
    %s54 = sphi 0, %s53
    %s70 = sphi 0, %s54
    %s74 = sphi 0, %s74
    %s76 = sphi 0, %s74
    %s77 = sphi 0, %s76
    %s91 = sphi 0, %s77
    %s95 = sphi 0, %s95
    %s97 = sphi 0, %s95
    %s98 = sphi 0, %s97
    %s112 = sphi 0, %s98
    %s116 = sphi 0, %s116
    %s118 = sphi 0, %s116
    %s119 = sphi 0, %s118
    %s133 = sphi 0, %s119
    %s137 = sphi 0, %s137
    %s139 = sphi 0, %s137
    %s140 = sphi 0, %s139
    %s154 = sphi 0, %s140
    %s160 = sphi 0, %s162
    %s163 = sphi 0, %s160
    %s164 = sphi 0, %s163
    %s180 = sphi 0, %s164
    %s186 = sphi 0, %s188
    %s189 = sphi 0, %s186
    %s190 = sphi 0, %s189
    %s206 = sphi 0, %s190
  $region4: #{_gcn_forward_impl.1} parent=0 // loop_header_branch
    %17 = sbr.rel (%p15) target = $region8
  $region5: #{_gcn_forward_impl.1} parent=0 // loop_body
    %s19 = ssub.s32 %s14, 1
    %s20 = ssub.s32 %s14, 2
    %s21 = sadd.s32 %s14, 1
    %s22 = ssub.s32 %s14, %s21
    %p23 = scmp.eq.s32.totalorder %s22, 0
    %s25 = sadd.s32 %s24, 1
    %s26 = scalar_select %p23, %s24, %s25
    %p29 = pneg %p23
    %p30 = scmp.eq.s32.totalorder %s14, 2
    %p31 = por %p29, %p30
    %p32 = scmp.ne.s32.totalorder %s24, %s27
    %p33 = scmp.eq.s32.totalorder %s14, 0
    %p34 = por %p32, %p33
    %p35 = scmp.ne.s32.totalorder %s24, %s27
    %p36 = scmp.eq.s32.totalorder %s19, 2
    %p37 = por %p35, %p36
    %p38 = scmp.ne.s32.totalorder %s27, %s28
    %p39 = scmp.eq.s32.totalorder %s19, 0
    %p40 = por %p38, %p39
    %p41 = scmp.ne.s32.totalorder %s27, %s28
    %p42 = scmp.eq.s32.totalorder %s20, 2
    %p43 = por %p41, %p42
    %p45 = scmp.ne.s32.totalorder %s28, %s44
    %p46 = scmp.eq.s32.totalorder %s20, 0
    %p47 = por %p45, %p46
    %s48 = ssub.s32 %s14, %s21
    %p49 = scmp.eq.s32.totalorder %s48, 0
    %s51 = sadd.s32 %s50, 1
    %s52 = scalar_select %p49, %s50, %s51
    %p55 = pneg %p49
    %p56 = scmp.eq.s32.totalorder %s14, 2
    %p57 = por %p55, %p56
    %p58 = scmp.ne.s32.totalorder %s50, %s53
    %p59 = scmp.eq.s32.totalorder %s14, 0
    %p60 = por %p58, %p59
    %p61 = scmp.ne.s32.totalorder %s50, %s53
    %p62 = scmp.eq.s32.totalorder %s19, 2
    %p63 = por %p61, %p62
    %p64 = scmp.ne.s32.totalorder %s53, %s54
    %p65 = scmp.eq.s32.totalorder %s19, 0
    %p66 = por %p64, %p65
    %p67 = scmp.ne.s32.totalorder %s53, %s54
    %p68 = scmp.eq.s32.totalorder %s20, 2
    %p69 = por %p67, %p68
    %p71 = scmp.ne.s32.totalorder %s54, %s70
    %p72 = scmp.eq.s32.totalorder %s20, 0
    %p73 = por %p71, %p72
    %s75 = sadd.s32 %s74, 1
    %p78 = scmp.eq.s32.totalorder %s14, 2
    %p79 = scmp.ne.s32.totalorder %s74, %s76
    %p80 = scmp.eq.s32.totalorder %s14, 0
    %p81 = por %p79, %p80
    %p82 = scmp.ne.s32.totalorder %s74, %s76
    %p83 = scmp.eq.s32.totalorder %s19, 2
    %p84 = por %p82, %p83
    %p85 = scmp.ne.s32.totalorder %s76, %s77
    %p86 = scmp.eq.s32.totalorder %s19, 0
    %p87 = por %p85, %p86
    %p88 = scmp.ne.s32.totalorder %s76, %s77
    %p89 = scmp.eq.s32.totalorder %s20, 2
    %p90 = por %p88, %p89
    %p92 = scmp.ne.s32.totalorder %s77, %s91
    %p93 = scmp.eq.s32.totalorder %s20, 0
    %p94 = por %p92, %p93
    %s96 = sadd.s32 %s95, 1
    %p99 = scmp.eq.s32.totalorder %s14, 2
    %p100 = scmp.ne.s32.totalorder %s95, %s97
    %p101 = scmp.eq.s32.totalorder %s14, 0
    %p102 = por %p100, %p101
    %p103 = scmp.ne.s32.totalorder %s95, %s97
    %p104 = scmp.eq.s32.totalorder %s19, 2
    %p105 = por %p103, %p104
    %p106 = scmp.ne.s32.totalorder %s97, %s98
    %p107 = scmp.eq.s32.totalorder %s19, 0
    %p108 = por %p106, %p107
    %p109 = scmp.ne.s32.totalorder %s97, %s98
    %p110 = scmp.eq.s32.totalorder %s20, 2
    %p111 = por %p109, %p110
    %p113 = scmp.ne.s32.totalorder %s98, %s112
    %p114 = scmp.eq.s32.totalorder %s20, 0
    %p115 = por %p113, %p114
    %s117 = sadd.s32 %s116, 1
    %p120 = scmp.eq.s32.totalorder %s14, 2
    %p121 = scmp.ne.s32.totalorder %s116, %s118
    %p122 = scmp.eq.s32.totalorder %s14, 0
    %p123 = por %p121, %p122
    %p124 = scmp.ne.s32.totalorder %s116, %s118
    %p125 = scmp.eq.s32.totalorder %s19, 2
    %p126 = por %p124, %p125
    %p127 = scmp.ne.s32.totalorder %s118, %s119
    %p128 = scmp.eq.s32.totalorder %s19, 0
    %p129 = por %p127, %p128
    %p130 = scmp.ne.s32.totalorder %s118, %s119
    %p131 = scmp.eq.s32.totalorder %s20, 2
    %p132 = por %p130, %p131
    %p134 = scmp.ne.s32.totalorder %s119, %s133
    %p135 = scmp.eq.s32.totalorder %s20, 0
    %p136 = por %p134, %p135
    %s138 = sadd.s32 %s137, 1
    %p141 = scmp.eq.s32.totalorder %s14, 2
    %p142 = scmp.ne.s32.totalorder %s137, %s139
    %p143 = scmp.eq.s32.totalorder %s14, 0
    %p144 = por %p142, %p143
    %p145 = scmp.ne.s32.totalorder %s137, %s139
    %p146 = scmp.eq.s32.totalorder %s19, 2
    %p147 = por %p145, %p146
    %p148 = scmp.ne.s32.totalorder %s139, %s140
    %p149 = scmp.eq.s32.totalorder %s19, 0
    %p150 = por %p148, %p149
    %p151 = scmp.ne.s32.totalorder %s139, %s140
    %p152 = scmp.eq.s32.totalorder %s20, 2
    %p153 = por %p151, %p152
    %p155 = scmp.ne.s32.totalorder %s140, %s154
    %p156 = scmp.eq.s32.totalorder %s20, 0
    %p157 = por %p155, %p156
    %s158 = ssub.s32 %s14, %s21
    %p159 = scmp.eq.s32.totalorder %s158, 0
    %s161 = sadd.s32 %s160, 1
    %s162 = scalar_select %p159, %s160, %s161
    %p165 = pneg %p159
    %p166 = scmp.eq.s32.totalorder %s14, 2
    %p167 = por %p165, %p166
    %p168 = scmp.ne.s32.totalorder %s160, %s163
    %p169 = scmp.eq.s32.totalorder %s14, 0
    %p170 = por %p168, %p169
    %p171 = scmp.ne.s32.totalorder %s160, %s163
    %p172 = scmp.eq.s32.totalorder %s19, 2
    %p173 = por %p171, %p172
    %p174 = scmp.ne.s32.totalorder %s163, %s164
    %p175 = scmp.eq.s32.totalorder %s19, 0
    %p176 = por %p174, %p175
    %p177 = scmp.ne.s32.totalorder %s163, %s164
    %p178 = scmp.eq.s32.totalorder %s20, 2
    %p179 = por %p177, %p178
    %p181 = scmp.ne.s32.totalorder %s164, %s180
    %p182 = scmp.eq.s32.totalorder %s20, 0
    %p183 = por %p181, %p182
    %s184 = ssub.s32 %s14, %s21
    %p185 = scmp.eq.s32.totalorder %s184, 0
    %s187 = sadd.s32 %s186, 1
    %s188 = scalar_select %p185, %s186, %s187
    %p191 = pneg %p185
    %p192 = scmp.eq.s32.totalorder %s14, 2
    %p193 = por %p191, %p192
    %p194 = scmp.ne.s32.totalorder %s186, %s189
    %p195 = scmp.eq.s32.totalorder %s14, 0
    %p196 = por %p194, %p195
    %p197 = scmp.ne.s32.totalorder %s186, %s189
    %p198 = scmp.eq.s32.totalorder %s19, 2
    %p199 = por %p197, %p198
    %p200 = scmp.ne.s32.totalorder %s189, %s190
    %p201 = scmp.eq.s32.totalorder %s19, 0
    %p202 = por %p200, %p201
    %p203 = scmp.ne.s32.totalorder %s189, %s190
    %p204 = scmp.eq.s32.totalorder %s20, 2
    %p205 = por %p203, %p204
    %p207 = scmp.ne.s32.totalorder %s190, %s206
    %p208 = scmp.eq.s32.totalorder %s20, 0
    %p209 = por %p207, %p208
    %p210 = scmp.le.s32.totalorder 1, %s14
    %p211 = scmp.lt.s32.totalorder %s14, 4
    %p212 = pnand %p210, %p211
    %p213 = pneg %p212
    // Predicated region
    $region9: #{_gcn_forward_impl.1} parent=5 // pred_check
      _
    $region10: #{_gcn_forward_impl.1} parent=5 // pred_check_branch
      %215 = sbr.rel (%p212) target = $region12
    $region11: #{_gcn_forward_impl.1} parent=5 // pred_region
      %s216 = ssub.s32 %s14, 1
      // Predicated region
      $region13: #{_gcn_forward_impl.1} parent=11 // pred_check
        %p217 = pneg %p87
      $region14: #{_gcn_forward_impl.1} parent=11 // pred_check_branch
        %219 = sbr.rel (%p217) target = $region16
      $region15: #{_gcn_forward_impl.1} parent=11 // pred_region
        _
      $region16: #{_gcn_forward_impl.1} parent=11 // pred_fallthru
        _
      // Predicated region
      $region17: #{_gcn_forward_impl.1} parent=11 // pred_check
        %p220 = pneg %p108
      $region18: #{_gcn_forward_impl.1} parent=11 // pred_check_branch
        %222 = sbr.rel (%p220) target = $region20
      $region19: #{_gcn_forward_impl.1} parent=11 // pred_region
        _
      $region20: #{_gcn_forward_impl.1} parent=11 // pred_fallthru
        _
      // Predicated region
      $region21: #{_gcn_forward_impl.1} parent=11 // pred_check
        %p223 = pneg %p129
      $region22: #{_gcn_forward_impl.1} parent=11 // pred_check_branch
        %225 = sbr.rel (%p223) target = $region24
      $region23: #{_gcn_forward_impl.1} parent=11 // pred_region
        _
      $region24: #{_gcn_forward_impl.1} parent=11 // pred_fallthru
        _
      // Predicated region
      $region25: #{_gcn_forward_impl.1} parent=11 // pred_check
        %p226 = pneg %p150
      $region26: #{_gcn_forward_impl.1} parent=11 // pred_check_branch
        %228 = sbr.rel (%p226) target = $region28
      $region27: #{_gcn_forward_impl.1} parent=11 // pred_region
        _
      $region28: #{_gcn_forward_impl.1} parent=11 // pred_fallthru
        _
    $region12: #{_gcn_forward_impl.1} parent=5 // pred_fallthru
      _
    %p229 = scmp.lt.s32.totalorder %s14, 3
    // Predicated region
    $region29: #{_gcn_forward_impl.1} parent=5 // pred_check
      %p230 = pneg %p229
    $region30: #{_gcn_forward_impl.1} parent=5 // pred_check_branch
      %232 = sbr.rel (%p230) target = $region32
    $region31: #{_gcn_forward_impl.1} parent=5 // pred_region
      // Predicated region
      $region33: #{_gcn_forward_impl.1} parent=31 // pred_check
        %p233 = pneg %p34
      $region34: #{_gcn_forward_impl.1} parent=31 // pred_check_branch
        %235 = sbr.rel (%p233) target = $region36
      $region35: #{_gcn_forward_impl.1} parent=31 // pred_region
        %p236 = scmp.lt.s32.totalorder %s14, 2
        %s237 = scalar_select %p236, %s14, 2
        %s238 = smul.addr %s237, 8
        %s239 = smul.addr %s238, 4
        %s240 = scalar_lea.vmem %s0, %s239
      $region36: #{_gcn_forward_impl.1} parent=31 // pred_fallthru
        _
      // Predicated region
      $region37: #{_gcn_forward_impl.1} parent=31 // pred_check
        %p241 = pneg %p60
      $region38: #{_gcn_forward_impl.1} parent=31 // pred_check_branch
        %243 = sbr.rel (%p241) target = $region40
      $region39: #{_gcn_forward_impl.1} parent=31 // pred_region
        %p244 = scmp.lt.s32.totalorder %s14, 2
        %s245 = scalar_select %p244, %s14, 2
        %s246 = smul.addr %s245, 8
        %s247 = smul.addr %s246, 4
        %s248 = scalar_lea.vmem %s1, %s247
      $region40: #{_gcn_forward_impl.1} parent=31 // pred_fallthru
        _
    $region32: #{_gcn_forward_impl.1} parent=5 // pred_fallthru
      _
    %p249 = scmp.le.s32.totalorder 1, %s14
    %p250 = scmp.lt.s32.totalorder %s14, 4
    %p251 = pnand %p249, %p250
    %p252 = pneg %p251
    // Predicated region
    $region41: #{_gcn_forward_impl.1} parent=5 // pred_check
      _
    $region42: #{_gcn_forward_impl.1} parent=5 // pred_check_branch
      %254 = sbr.rel (%p251) target = $region44
    $region43: #{_gcn_forward_impl.1} parent=5 // pred_region
      %s255 = ssub.s32 %s14, 1
      %p256 = scmp.lt.s32.totalorder %s19, 2
      %s257 = scalar_select %p256, %s19, 2
      %s258 = smul.addr %s257, 8
      %s259 = smul.addr %s258, 4
      %s260 = scalar_lea.vmem %s0, %s259
      %p261 = pneg %p40
      %p262 = pneg %p37
      %p263 = scmp.lt.s32.totalorder %s19, 2
      %s264 = scalar_select %p263, %s19, 2
      %s265 = smul.addr %s264, 8
      %s266 = smul.addr %s265, 4
      %s267 = scalar_lea.vmem %s1, %s266
      %p268 = pneg %p66
      %p269 = pneg %p63
      %p270 = pneg %p87
      %p271 = pneg %p84
      %p272 = pneg %p108
      %p273 = pneg %p105
      %p274 = pneg %p129
      %p275 = pneg %p126
      %p276 = pneg %p150
      %p277 = pneg %p147
      %p278 = pneg %p176
      %p279 = pneg %p173
      %p280 = scmp.lt.s32.totalorder %s19, 2
      %s281 = scalar_select %p280, %s19, 2
      %s282 = smul.addr %s281, 8
      %s283 = smul.addr %s282, 4
      %s284 = scalar_lea.vmem %s6, %s283
      %p285 = pneg %p202
      %p286 = pneg %p199
      %p287 = scmp.lt.s32.totalorder %s19, 2
      %s288 = scalar_select %p287, %s19, 2
      %s289 = smul.addr %s288, 8
      %s290 = smul.addr %s289, 8
      %s291 = scalar_lea.vmem %s7, %s290
      %p292 = scmp.lt.s32.totalorder %s19, 2
      %s293 = scalar_select %p292, %s19, 2
      %s294 = smul.addr %s293, 8
      %s295 = smul.addr %s294, 4
      %s296 = scalar_lea.vmem %s0, %s295
      %p297 = scmp.lt.s32.totalorder %s19, 2
      %s298 = scalar_select %p297, %s19, 2
      %s299 = smul.addr %s298, 8
      %s300 = smul.addr %s299, 4
      %s301 = scalar_lea.vmem %s1, %s300
      %p302 = scmp.lt.s32.totalorder %s19, 2
      %s303 = scalar_select %p302, %s19, 2
      %s304 = smul.addr %s303, 8
      %s305 = smul.addr %s304, 4
      %s306 = scalar_lea.vmem %s6, %s305
      %p307 = scmp.lt.s32.totalorder %s19, 2
      %s308 = scalar_select %p307, %s19, 2
      %s309 = smul.addr %s308, 8
      %s310 = smul.addr %s309, 8
      %s311 = scalar_lea.vmem %s7, %s310
      %v313 = vld [vmem:[%s301] sm:$0xf]
      %v314 = vld [vmem:[%s301 + $0x4] sm:$0xf]
      %v315 = vld [vmem:[%s301 + $0x8] sm:$0xf]
      %v316 = vld [vmem:[%s301 + $0xc] sm:$0xf]
      %v317 = vld [vmem:[%s301 + $0x10] sm:$0xf]
      %v318 = vld [vmem:[%s301 + $0x14] sm:$0xf]
      %v319 = vld [vmem:[%s301 + $0x18] sm:$0xf]
      %v320 = vld [vmem:[%s301 + $0x1c] sm:$0xf]
      %v321 = vld [vmem:[%s296] sm:$0xf]
      %v322 = vld [vmem:[%s296 + $0x4] sm:$0xf]
      %v323 = vld [vmem:[%s296 + $0x8] sm:$0xf]
      %v324 = vld [vmem:[%s296 + $0xc] sm:$0xf]
      %v325 = vld [vmem:[%s296 + $0x10] sm:$0xf]
      %v326 = vld [vmem:[%s296 + $0x14] sm:$0xf]
      %v327 = vld [vmem:[%s296 + $0x18] sm:$0xf]
      %v328 = vld [vmem:[%s296 + $0x1c] sm:$0xf]
      %v329 = vld [vmem:[%s2] sm:$0xf]
      %v330 = vld [vmem:[%s2 + $0x4] sm:$0xf]
      %v331 = vld [vmem:[%s2 + $0x8] sm:$0xf]
      %v332 = vld [vmem:[%s2 + $0xc] sm:$0xf]
      %v341 = vunpack.c.l.b16 %v321
      %v342 = vunpack.c.l.b16 %v322
      %v343 = vunpack.c.l.b16 %v323
      %v344 = vunpack.c.l.b16 %v324
      %v345 = vunpack.c.l.b16 %v325
      %v346 = vunpack.c.l.b16 %v326
      %v347 = vunpack.c.l.b16 %v327
      %v348 = vunpack.c.l.b16 %v328
      %v349 = vpack.c.b16 %v342, %v341
      %v350 = vpack.c.b16 %v344, %v343
      %v351 = vpack.c.b16 %v346, %v345
      %v352 = vpack.c.b16 %v348, %v347
      %v357 = vunpack.c.l.b16 %v329
      %v358 = vunpack.c.l.b16 %v330
      %v359 = vunpack.c.l.b16 %v331
      %v360 = vunpack.c.l.b16 %v332
      %v361 = vpack.c.b16 %v358, %v357
      %v362 = vpack.c.b16 %v360, %v359
      %vm365 = vcmask 261120
      %v367 = vsel %vm365, %v349, 0
      %v370 = vsel %vm365, %v350, 0
      %v373 = vsel %vm365, %v351, 0
      %v376 = vsel %vm365, %v352, 0
      %378 = vmatprep.subr.bf16.mxu0 0
      %379 = vmatpush1.bf16.msra.mxu0 %v361
      %380 = vmatprep.subr.bf16.mxu0 0
      %381 = vmatpush1.bf16.msra.mxu0 %v362
      %382 = vmatprep.subr.bf16.mxu0 0
      %383 = vmatpush1.bf16.msra.mxu0 0
      %384 = vmatprep.subr.bf16.mxu0 0
      %385 = vmatpush1.bf16.msra.mxu0 0
      %386 = vmatprep.subr.bf16.mxu0 0
      %387 = vmatpush1.bf16.msra.mxu0 0
      %388 = vmatprep.subr.bf16.mxu0 0
      %389 = vmatpush1.bf16.msra.mxu0 0
      %390 = vmatprep.subr.bf16.mxu0 0
      %391 = vmatpush1.bf16.msra.mxu0 0
      %392 = vmatprep.subr.bf16.mxu0 0
      %393 = vmatpush1.bf16.msra.mxu0 0
      %394 = vmatprep.subr.bf16.mxu0 0
      %395 = vmatpush1.bf16.msra.mxu0 0
      %396 = vmatprep.subr.bf16.mxu0 0
      %397 = vmatpush1.bf16.msra.mxu0 0
      %398 = vmatprep.subr.bf16.mxu0 0
      %399 = vmatpush1.bf16.msra.mxu0 0
      %400 = vmatprep.subr.bf16.mxu0 0
      %401 = vmatpush1.bf16.msra.mxu0 0
      %402 = vmatprep.subr.bf16.mxu0 0
      %403 = vmatpush1.bf16.msra.mxu0 0
      %404 = vmatprep.subr.bf16.mxu0 0
      %405 = vmatpush1.bf16.msra.mxu0 0
      %406 = vmatprep.subr.bf16.mxu0 0
      %407 = vmatpush1.bf16.msra.mxu0 0
      %408 = vmatprep.subr.bf16.mxu0 0
      %409 = vmatpush1.bf16.msra.mxu0 0
      %410 = vmatprep.mubr.bf16.mxu0 0
      %411 = vmatmul.mubr.bf16.gmra.mrb[0].mxu0 %v367
      %v412 = vpop.f32.mrb[0].mxu0
      %v413 = vadd.f32 0.0, %v412
      %v414 = vpop.f32.mrb[0].mxu0
      %v415 = vpop.f32.mrb[0].mxu0
      %v416 = vadd.f32 0.0, %v415
      %v417 = vpop.f32.mrb[0].mxu0
      %418 = vmatprep.mubr.bf16.mxu0 0
      %419 = vmatmul.mubr.bf16.gmra.mrb[0].mxu0 %v370
      %v420 = vpop.f32.mrb[0].mxu0
      %v421 = vadd.f32 0.0, %v420
      %v422 = vpop.f32.mrb[0].mxu0
      %v423 = vpop.f32.mrb[0].mxu0
      %v424 = vadd.f32 0.0, %v423
      %v425 = vpop.f32.mrb[0].mxu0
      %426 = vmatprep.mubr.bf16.mxu0 0
      %427 = vmatmul.mubr.bf16.gmra.mrb[0].mxu0 %v373
      %v428 = vpop.f32.mrb[0].mxu0
      %v429 = vadd.f32 0.0, %v428
      %v430 = vpop.f32.mrb[0].mxu0
      %v431 = vpop.f32.mrb[0].mxu0
      %v432 = vadd.f32 0.0, %v431
      %v433 = vpop.f32.mrb[0].mxu0
      %434 = vmatprep.mubr.bf16.mxu0 0
      %435 = vmatmul.mubr.bf16.gmra.mrb[0].mxu0 %v376
      %v436 = vpop.f32.mrb[0].mxu0
      %v437 = vadd.f32 0.0, %v436
      %v438 = vpop.f32.mrb[0].mxu0
      %v439 = vpop.f32.mrb[0].mxu0
      %v440 = vadd.f32 0.0, %v439
      %v441 = vpop.f32.mrb[0].mxu0
      %442 = vdwg.mxu0
      %v443 = vpack.c.bf16 %v416, %v413
      %v444 = vpack.c.bf16 %v424, %v421
      %v445 = vpack.c.bf16 %v432, %v429
      %v446 = vpack.c.bf16 %v440, %v437
      %v447 = vld [vmem:[%s3] sm:$0x1]
      %v449 = vlaneseq
      %v450 = vshrl.u32 %v449, 7
      %v451 = vsub.s32 0, %v450
      %v452 = vrot.slane %v447, %v451
      %v462 = vunpack.c.l.b16 %v313
      %v463 = vunpack.c.l.b16 %v314
      %v464 = vunpack.c.l.b16 %v315
      %v465 = vunpack.c.l.b16 %v316
      %v466 = vunpack.c.l.b16 %v317
      %v467 = vunpack.c.l.b16 %v318
      %v468 = vunpack.c.l.b16 %v319
      %v469 = vunpack.c.l.b16 %v320
      %v470 = vpack.c.b16 %v463, %v462
      %v471 = vpack.c.b16 %v465, %v464
      %v472 = vpack.c.b16 %v467, %v466
      %v473 = vpack.c.b16 %v469, %v468
      %vm474 = vcmask 523264
      %v476 = vsel %vm474, %v470, 0
      %v479 = vsel %vm474, %v471, 0
      %v482 = vsel %vm474, %v472, 0
      %v485 = vsel %vm474, %v473, 0
      %487 = vmatprep.subr.bf16.mxu0 0
      %488 = vmatpush1.bf16.msra.mxu0 %v443
      %489 = vmatprep.subr.bf16.mxu0 0
      %490 = vmatpush1.bf16.msra.mxu0 %v444
      %491 = vmatprep.subr.bf16.mxu0 0
      %492 = vmatpush1.bf16.msra.mxu0 %v445
      %493 = vmatprep.subr.bf16.mxu0 0
      %494 = vmatpush1.bf16.msra.mxu0 %v446
      %495 = vmatprep.subr.bf16.mxu0 0
      %496 = vmatpush1.bf16.msra.mxu0 0
      %497 = vmatprep.subr.bf16.mxu0 0
      %498 = vmatpush1.bf16.msra.mxu0 0
      %499 = vmatprep.subr.bf16.mxu0 0
      %500 = vmatpush1.bf16.msra.mxu0 0
      %501 = vmatprep.subr.bf16.mxu0 0
      %502 = vmatpush1.bf16.msra.mxu0 0
      %503 = vmatprep.subr.bf16.mxu0 0
      %504 = vmatpush1.bf16.msra.mxu0 0
      %505 = vmatprep.subr.bf16.mxu0 0
      %506 = vmatpush1.bf16.msra.mxu0 0
      %507 = vmatprep.subr.bf16.mxu0 0
      %508 = vmatpush1.bf16.msra.mxu0 0
      %509 = vmatprep.subr.bf16.mxu0 0
      %510 = vmatpush1.bf16.msra.mxu0 0
      %511 = vmatprep.subr.bf16.mxu0 0
      %512 = vmatpush1.bf16.msra.mxu0 0
      %513 = vmatprep.subr.bf16.mxu0 0
      %514 = vmatpush1.bf16.msra.mxu0 0
      %515 = vmatprep.subr.bf16.mxu0 0
      %516 = vmatpush1.bf16.msra.mxu0 0
      %517 = vmatprep.subr.bf16.mxu0 0
      %518 = vmatpush1.bf16.msra.mxu0 0
      %519 = vmatprep.mubr.bf16.mxu0 0
      %520 = vmatmul.mubr.bf16.gmra.mrb[0].mxu0 %v476
      %v521 = vpop.f32.mrb[0].mxu0
      %v522 = vadd.f32 %v452, %v521
      %v523 = vpop.f32.mrb[0].mxu0
      %v524 = vpop.f32.mrb[0].mxu0
      %v525 = vadd.f32 %v452, %v524
      %v526 = vpop.f32.mrb[0].mxu0
      %527 = vmatprep.mubr.bf16.mxu0 0
      %528 = vmatmul.mubr.bf16.gmra.mrb[0].mxu0 %v479
      %v529 = vpop.f32.mrb[0].mxu0
      %v530 = vadd.f32 %v452, %v529
      %v531 = vpop.f32.mrb[0].mxu0
      %v532 = vpop.f32.mrb[0].mxu0
      %v533 = vadd.f32 %v452, %v532
      %v534 = vpop.f32.mrb[0].mxu0
      %535 = vmatprep.mubr.bf16.mxu0 0
      %536 = vmatmul.mubr.bf16.gmra.mrb[0].mxu0 %v482
      %v537 = vpop.f32.mrb[0].mxu0
      %v538 = vadd.f32 %v452, %v537
      %v539 = vpop.f32.mrb[0].mxu0
      %v540 = vpop.f32.mrb[0].mxu0
      %v541 = vadd.f32 %v452, %v540
      %v542 = vpop.f32.mrb[0].mxu0
      %543 = vmatprep.mubr.bf16.mxu0 0
      %544 = vmatmul.mubr.bf16.gmra.mrb[0].mxu0 %v485
      %v545 = vpop.f32.mrb[0].mxu0
      %v546 = vadd.f32 %v452, %v545
      %v547 = vpop.f32.mrb[0].mxu0
      %v548 = vpop.f32.mrb[0].mxu0
      %v549 = vadd.f32 %v452, %v548
      %v550 = vpop.f32.mrb[0].mxu0
      %551 = vdwg.mxu0
      %v552 = vmax.f32 %v522, 0.0
      %v553 = vmax.f32 %v525, 0.0
      %v554 = vmax.f32 %v530, 0.0
      %v555 = vmax.f32 %v533, 0.0
      %v556 = vmax.f32 %v538, 0.0
      %v557 = vmax.f32 %v541, 0.0
      %v558 = vmax.f32 %v546, 0.0
      %v559 = vmax.f32 %v549, 0.0
      %v560 = vpack.c.bf16 %v553, %v552
      %v561 = vpack.c.bf16 %v555, %v554
      %v562 = vpack.c.bf16 %v557, %v556
      %v563 = vpack.c.bf16 %v559, %v558
      %v568 = vunpack.c.l.b16 %v560
      %v569 = vunpack.c.h.b16 %v560
      %v570 = vunpack.c.l.b16 %v561
      %v571 = vunpack.c.h.b16 %v561
      %v572 = vunpack.c.l.b16 %v562
      %v573 = vunpack.c.h.b16 %v562
      %v574 = vunpack.c.l.b16 %v563
      %v575 = vunpack.c.h.b16 %v563
      %v576 = vpack.c.b16 %v568, %v568
      %v577 = vpack.c.b16 %v569, %v569
      %v578 = vpack.c.b16 %v570, %v570
      %v579 = vpack.c.b16 %v571, %v571
      %v580 = vpack.c.b16 %v572, %v572
      %v581 = vpack.c.b16 %v573, %v573
      %v582 = vpack.c.b16 %v574, %v574
      %v583 = vpack.c.b16 %v575, %v575
      %592 = vst [vmem:[%s306] sm:$0xf] %v576
      %593 = vst [vmem:[%s306 + $0x4] sm:$0xf] %v577
      %594 = vst [vmem:[%s306 + $0x8] sm:$0xf] %v578
      %595 = vst [vmem:[%s306 + $0xc] sm:$0xf] %v579
      %596 = vst [vmem:[%s306 + $0x10] sm:$0xf] %v580
      %597 = vst [vmem:[%s306 + $0x14] sm:$0xf] %v581
      %598 = vst [vmem:[%s306 + $0x18] sm:$0xf] %v582
      %599 = vst [vmem:[%s306 + $0x1c] sm:$0xf] %v583
      %v600 = vld [vmem:[%s4] sm:$0xf]
      %v601 = vld [vmem:[%s4 + $0x4] sm:$0xf]
      %v602 = vld [vmem:[%s4 + $0x8] sm:$0xf]
      %v603 = vld [vmem:[%s4 + $0xc] sm:$0xf]
      %v604 = vld [vmem:[%s4 + $0x10] sm:$0xf]
      %v605 = vld [vmem:[%s4 + $0x14] sm:$0xf]
      %v606 = vld [vmem:[%s4 + $0x18] sm:$0xf]
      %v607 = vld [vmem:[%s4 + $0x1c] sm:$0xf]
      %v608 = vld [vmem:[%s4 + $0x20] sm:$0xf]
      %v609 = vld [vmem:[%s4 + $0x24] sm:$0xf]
      %v610 = vld [vmem:[%s4 + $0x28] sm:$0xf]
      %v611 = vld [vmem:[%s4 + $0x2c] sm:$0xf]
      %v612 = vld [vmem:[%s4 + $0x30] sm:$0xf]
      %v613 = vld [vmem:[%s4 + $0x34] sm:$0xf]
      %v614 = vld [vmem:[%s4 + $0x38] sm:$0xf]
      %v615 = vld [vmem:[%s4 + $0x3c] sm:$0xf]
      %v632 = vunpack.c.l.b16 %v600
      %v633 = vunpack.c.l.b16 %v601
      %v634 = vunpack.c.l.b16 %v602
      %v635 = vunpack.c.l.b16 %v603
      %v636 = vunpack.c.l.b16 %v604
      %v637 = vunpack.c.l.b16 %v605
      %v638 = vunpack.c.l.b16 %v606
      %v639 = vunpack.c.l.b16 %v607
      %v640 = vunpack.c.l.b16 %v608
      %v641 = vunpack.c.l.b16 %v609
      %v642 = vunpack.c.l.b16 %v610
      %v643 = vunpack.c.l.b16 %v611
      %v644 = vunpack.c.l.b16 %v612
      %v645 = vunpack.c.l.b16 %v613
      %v646 = vunpack.c.l.b16 %v614
      %v647 = vunpack.c.l.b16 %v615
      %v648 = vpack.c.b16 %v633, %v632
      %v649 = vpack.c.b16 %v635, %v634
      %v650 = vpack.c.b16 %v637, %v636
      %v651 = vpack.c.b16 %v639, %v638
      %v652 = vpack.c.b16 %v641, %v640
      %v653 = vpack.c.b16 %v643, %v642
      %v654 = vpack.c.b16 %v645, %v644
      %v655 = vpack.c.b16 %v647, %v646
      %664 = vmatprep.subr.bf16.mxu0 0
      %665 = vmatpush1.bf16.msra.mxu0 %v648
      %666 = vmatprep.subr.bf16.mxu0 0
      %667 = vmatpush1.bf16.msra.mxu0 %v649
      %668 = vmatprep.subr.bf16.mxu0 0
      %669 = vmatpush1.bf16.msra.mxu0 %v650
      %670 = vmatprep.subr.bf16.mxu0 0
      %671 = vmatpush1.bf16.msra.mxu0 %v651
      %672 = vmatprep.subr.bf16.mxu0 0
      %673 = vmatpush1.bf16.msra.mxu0 %v652
      %674 = vmatprep.subr.bf16.mxu0 0
      %675 = vmatpush1.bf16.msra.mxu0 %v653
      %676 = vmatprep.subr.bf16.mxu0 0
      %677 = vmatpush1.bf16.msra.mxu0 %v654
      %678 = vmatprep.subr.bf16.mxu0 0
      %679 = vmatpush1.bf16.msra.mxu0 %v655
      %680 = vmatprep.subr.bf16.mxu0 0
      %681 = vmatpush1.bf16.msra.mxu0 0
      %682 = vmatprep.subr.bf16.mxu0 0
      %683 = vmatpush1.bf16.msra.mxu0 0
      %684 = vmatprep.subr.bf16.mxu0 0
      %685 = vmatpush1.bf16.msra.mxu0 0
      %686 = vmatprep.subr.bf16.mxu0 0
      %687 = vmatpush1.bf16.msra.mxu0 0
      %688 = vmatprep.subr.bf16.mxu0 0
      %689 = vmatpush1.bf16.msra.mxu0 0
      %690 = vmatprep.subr.bf16.mxu0 0
      %691 = vmatpush1.bf16.msra.mxu0 0
      %692 = vmatprep.subr.bf16.mxu0 0
      %693 = vmatpush1.bf16.msra.mxu0 0
      %694 = vmatprep.subr.bf16.mxu0 0
      %695 = vmatpush1.bf16.msra.mxu0 0
      %696 = vmatprep.mubr.bf16.mxu0 0
      %697 = vmatmul.mubr.bf16.gmra.mrb[0].mxu0 %v560
      %v698 = vpop.f32.mrb[0].mxu0
      %v699 = vadd.f32 0.0, %v698
      %v700 = vpop.f32.mrb[0].mxu0
      %v701 = vpop.f32.mrb[0].mxu0
      %v702 = vadd.f32 0.0, %v701
      %v703 = vpop.f32.mrb[0].mxu0
      %704 = vmatprep.mubr.bf16.mxu0 0
      %705 = vmatmul.mubr.bf16.gmra.mrb[0].mxu0 %v561
      %v706 = vpop.f32.mrb[0].mxu0
      %v707 = vadd.f32 0.0, %v706
      %v708 = vpop.f32.mrb[0].mxu0
      %v709 = vpop.f32.mrb[0].mxu0
      %v710 = vadd.f32 0.0, %v709
      %v711 = vpop.f32.mrb[0].mxu0
      %712 = vmatprep.mubr.bf16.mxu0 0
      %713 = vmatmul.mubr.bf16.gmra.mrb[0].mxu0 %v562
      %v714 = vpop.f32.mrb[0].mxu0
      %v715 = vadd.f32 0.0, %v714
      %v716 = vpop.f32.mrb[0].mxu0
      %v717 = vpop.f32.mrb[0].mxu0
      %v718 = vadd.f32 0.0, %v717
      %v719 = vpop.f32.mrb[0].mxu0
      %720 = vmatprep.mubr.bf16.mxu0 0
      %721 = vmatmul.mubr.bf16.gmra.mrb[0].mxu0 %v563
      %v722 = vpop.f32.mrb[0].mxu0
      %v723 = vadd.f32 0.0, %v722
      %v724 = vpop.f32.mrb[0].mxu0
      %v725 = vpop.f32.mrb[0].mxu0
      %v726 = vadd.f32 0.0, %v725
      %v727 = vpop.f32.mrb[0].mxu0
      %728 = vdwg.mxu0
      %v729 = vpack.c.bf16 %v702, %v699
      %v730 = vpack.c.bf16 %v710, %v707
      %v731 = vpack.c.bf16 %v718, %v715
      %v732 = vpack.c.bf16 %v726, %v723
      %v733 = vld [vmem:[%s5] sm:$0x1]
      %v735 = vlaneseq
      %v736 = vshrl.u32 %v735, 7
      %v737 = vsub.s32 0, %v736
      %v738 = vrot.slane %v733, %v737
      %740 = vmatprep.subr.bf16.mxu0 0
      %741 = vmatpush1.bf16.msra.mxu0 %v729
      %742 = vmatprep.subr.bf16.mxu0 0
      %743 = vmatpush1.bf16.msra.mxu0 %v730
      %744 = vmatprep.subr.bf16.mxu0 0
      %745 = vmatpush1.bf16.msra.mxu0 %v731
      %746 = vmatprep.subr.bf16.mxu0 0
      %747 = vmatpush1.bf16.msra.mxu0 %v732
      %748 = vmatprep.subr.bf16.mxu0 0
      %749 = vmatpush1.bf16.msra.mxu0 0
      %750 = vmatprep.subr.bf16.mxu0 0
      %751 = vmatpush1.bf16.msra.mxu0 0
      %752 = vmatprep.subr.bf16.mxu0 0
      %753 = vmatpush1.bf16.msra.mxu0 0
      %754 = vmatprep.subr.bf16.mxu0 0
      %755 = vmatpush1.bf16.msra.mxu0 0
      %756 = vmatprep.subr.bf16.mxu0 0
      %757 = vmatpush1.bf16.msra.mxu0 0
      %758 = vmatprep.subr.bf16.mxu0 0
      %759 = vmatpush1.bf16.msra.mxu0 0
      %760 = vmatprep.subr.bf16.mxu0 0
      %761 = vmatpush1.bf16.msra.mxu0 0
      %762 = vmatprep.subr.bf16.mxu0 0
      %763 = vmatpush1.bf16.msra.mxu0 0
      %764 = vmatprep.subr.bf16.mxu0 0
      %765 = vmatpush1.bf16.msra.mxu0 0
      %766 = vmatprep.subr.bf16.mxu0 0
      %767 = vmatpush1.bf16.msra.mxu0 0
      %768 = vmatprep.subr.bf16.mxu0 0
      %769 = vmatpush1.bf16.msra.mxu0 0
      %770 = vmatprep.subr.bf16.mxu0 0
      %771 = vmatpush1.bf16.msra.mxu0 0
      %772 = vmatprep.mubr.bf16.mxu0 0
      %773 = vmatmul.mubr.bf16.gmra.mrb[0].mxu0 %v476
      %v774 = vpop.f32.mrb[0].mxu0
      %v775 = vadd.f32 %v738, %v774
      %v776 = vpop.f32.mrb[0].mxu0
      %v777 = vpop.f32.mrb[0].mxu0
      %v778 = vadd.f32 %v738, %v777
      %v779 = vpop.f32.mrb[0].mxu0
      %780 = vmatprep.mubr.bf16.mxu0 0
      %781 = vmatmul.mubr.bf16.gmra.mrb[0].mxu0 %v479
      %v782 = vpop.f32.mrb[0].mxu0
      %v783 = vadd.f32 %v738, %v782
      %v784 = vpop.f32.mrb[0].mxu0
      %v785 = vpop.f32.mrb[0].mxu0
      %v786 = vadd.f32 %v738, %v785
      %v787 = vpop.f32.mrb[0].mxu0
      %788 = vmatprep.mubr.bf16.mxu0 0
      %789 = vmatmul.mubr.bf16.gmra.mrb[0].mxu0 %v482
      %v790 = vpop.f32.mrb[0].mxu0
      %v791 = vadd.f32 %v738, %v790
      %v792 = vpop.f32.mrb[0].mxu0
      %v793 = vpop.f32.mrb[0].mxu0
      %v794 = vadd.f32 %v738, %v793
      %v795 = vpop.f32.mrb[0].mxu0
      %796 = vmatprep.mubr.bf16.mxu0 0
      %797 = vmatmul.mubr.bf16.gmra.mrb[0].mxu0 %v485
      %v798 = vpop.f32.mrb[0].mxu0
      %v799 = vadd.f32 %v738, %v798
      %v800 = vpop.f32.mrb[0].mxu0
      %v801 = vpop.f32.mrb[0].mxu0
      %v802 = vadd.f32 %v738, %v801
      %v803 = vpop.f32.mrb[0].mxu0
      %804 = vdwg.mxu0
      %805 = vst [vmem:[%s311] sm:$0xff] %v775
      %806 = vst [vmem:[%s311 + $0x8] sm:$0xff] %v778
      %807 = vst [vmem:[%s311 + $0x10] sm:$0xff] %v783
      %808 = vst [vmem:[%s311 + $0x18] sm:$0xff] %v786
      %809 = vst [vmem:[%s311 + $0x20] sm:$0xff] %v791
      %810 = vst [vmem:[%s311 + $0x28] sm:$0xff] %v794
      %811 = vst [vmem:[%s311 + $0x30] sm:$0xff] %v799
      %812 = vst [vmem:[%s311 + $0x38] sm:$0xff] %v802
      %p813 = scmp.lt.s32.totalorder %s19, 2
      %s814 = scalar_select %p813, %s19, 2
      %s815 = smul.addr %s814, 8
      %s816 = smul.addr %s815, 4
      %s817 = scalar_lea.vmem %s6, %s816
      %p818 = scmp.lt.s32.totalorder %s19, 2
      %s819 = scalar_select %p818, %s19, 2
      %s820 = smul.addr %s819, 8
      %s821 = smul.addr %s820, 8
      %s822 = scalar_lea.vmem %s7, %s821
      // Predicated region
      $region45: #{_gcn_forward_impl.1} parent=43 // pred_check
        %p823 = pneg %p173
      $region46: #{_gcn_forward_impl.1} parent=43 // pred_check_branch
        %825 = sbr.rel (%p823) target = $region48
      $region47: #{_gcn_forward_impl.1} parent=43 // pred_region
        _
      $region48: #{_gcn_forward_impl.1} parent=43 // pred_fallthru
        _
      // Predicated region
      $region49: #{_gcn_forward_impl.1} parent=43 // pred_check
        %p826 = pneg %p199
      $region50: #{_gcn_forward_impl.1} parent=43 // pred_check_branch
        %828 = sbr.rel (%p826) target = $region52
      $region51: #{_gcn_forward_impl.1} parent=43 // pred_region
        _
      $region52: #{_gcn_forward_impl.1} parent=43 // pred_fallthru
        _
    $region44: #{_gcn_forward_impl.1} parent=5 // pred_fallthru
      _
    %p829 = scmp.le.s32.totalorder 2, %s14
    // Predicated region
    $region53: #{_gcn_forward_impl.1} parent=5 // pred_check
      %p830 = pneg %p829
    $region54: #{_gcn_forward_impl.1} parent=5 // pred_check_branch
      %832 = sbr.rel (%p830) target = $region56
    $region55: #{_gcn_forward_impl.1} parent=5 // pred_region
      %s833 = ssub.s32 %s14, 2
      // Predicated region
      $region57: #{_gcn_forward_impl.1} parent=55 // pred_check
        %p834 = pneg %p179
      $region58: #{_gcn_forward_impl.1} parent=55 // pred_check_branch
        %836 = sbr.rel (%p834) target = $region60
      $region59: #{_gcn_forward_impl.1} parent=55 // pred_region
        %p837 = scmp.lt.s32.totalorder %s20, 2
        %s838 = scalar_select %p837, %s20, 2
        %s839 = smul.addr %s838, 8
        %s840 = smul.addr %s839, 4
        %s841 = scalar_lea.vmem %s6, %s840
      $region60: #{_gcn_forward_impl.1} parent=55 // pred_fallthru
        _
      // Predicated region
      $region61: #{_gcn_forward_impl.1} parent=55 // pred_check
        %p842 = pneg %p205
      $region62: #{_gcn_forward_impl.1} parent=55 // pred_check_branch
        %844 = sbr.rel (%p842) target = $region64
      $region63: #{_gcn_forward_impl.1} parent=55 // pred_region
        %p845 = scmp.lt.s32.totalorder %s20, 2
        %s846 = scalar_select %p845, %s20, 2
        %s847 = smul.addr %s846, 8
        %s848 = smul.addr %s847, 8
        %s849 = scalar_lea.vmem %s7, %s848
      $region64: #{_gcn_forward_impl.1} parent=55 // pred_fallthru
        _
    $region56: #{_gcn_forward_impl.1} parent=5 // pred_fallthru
      _
  $region6: #{_gcn_forward_impl.1} parent=0 // loop_footer
    %s18 = sadd.s32 1, %s14
  $region7: #{_gcn_forward_impl.1} parent=0 // loop_footer_branch
    %13 = sbr.rel target = $region3
  $region8: #{_gcn_forward_impl.1} parent=0 // loop_exit
    _

</llo_original>
